<compile_context>
chip_gen: v6e
topology: v6e:2x2x1
jax: 0.10.0
libtpu: 0.0.40
codegen_flags: <defaults>
</compile_context>

<pallas_src>
import math
import functools

import jax
import jax.numpy as jnp
from jax.experimental import pallas as pl
from jax.experimental.pallas import tpu as pltpu


def _mir_kernel(x_ref, w1_ref, b1_ref, w2_ref, b2_ref, w3_ref, b3_ref,
                wc_ref, bc_ref, o_ref):
    # x_ref : (TB, N*N_i) f32         w1_ref: (N*N_i, N*N_o) bf16   b*_ref: (1, N*N_o) f32
    # w2/w3 : (N*N_o, N*N_o) bf16     wc_ref: (N*N_o, N*N_c) bf16   bc_ref: (1, N*N_c) f32
    # o_ref : (TB, N*N_c) f32
    x = x_ref[...].astype(jnp.bfloat16)     # on-chip cast (hidden under x-tile DMA)
    h = jnp.dot(x, w1_ref[...], preferred_element_type=jnp.float32) + b1_ref[...]
    h = jnp.maximum(h, 0.0).astype(jnp.bfloat16)
    h = jnp.dot(h, w2_ref[...], preferred_element_type=jnp.float32) + b2_ref[...]
    h = jnp.maximum(h, 0.0).astype(jnp.bfloat16)
    h = jnp.dot(h, w3_ref[...], preferred_element_type=jnp.float32) + b3_ref[...]
    h = jnp.maximum(h, 0.0).astype(jnp.bfloat16)
    # Classifier head is linear (logits).
    o_ref[...] = jnp.dot(h, wc_ref[...], preferred_element_type=jnp.float32) + bc_ref[...]


def _block_diag(w):
    """Pack per-index weights (N, I, O) into a block-diagonal (N*I, N*O) matrix."""
    n, i, o = w.shape
    eye = jnp.eye(n, dtype=w.dtype)
    # out[a*I + b, c*O + d] = w[a, b, d] * delta(a, c)
    return jnp.einsum('nio,nm->nimo', w, eye).reshape(n * i, n * o)


def _round_up(x, m):
    return (x + m - 1) // m * m


def pack_multi_ion_readout_params(params):
    """One-time packing of per-index weights into kernel-ready block-diag operands.

    Hoisted out of the per-call forward (perf review): packing is O(N^2) weight bytes
    and should not run on every inference step.
    """
    W1, b1, W2, b2, W3, b3, Wc, bc = params
    N, N_i, N_o = W1.shape
    N_c = Wc.shape[-1]
    packed = (
        _block_diag(W1).astype(jnp.bfloat16),            # (N*N_i, N*N_o)
        b1.reshape(1, N * N_o).astype(jnp.float32),
        _block_diag(W2).astype(jnp.bfloat16),            # (N*N_o, N*N_o)
        b2.reshape(1, N * N_o).astype(jnp.float32),
        _block_diag(W3).astype(jnp.bfloat16),
        b3.reshape(1, N * N_o).astype(jnp.float32),
        _block_diag(Wc).astype(jnp.bfloat16),            # (N*N_o, N*N_c)
        bc.reshape(1, N * N_c).astype(jnp.float32),
    )
    return jax.tree_util.tree_map(jnp.asarray, packed)


@functools.partial(jax.jit, static_argnames=("tb",))
def multi_ion_readout_forward(x, packed, *, tb=1024):
    """x: (..., N, H, W). packed: output of pack_multi_ion_readout_params.
    Returns (..., N, N_c) float32 logits."""
    w1, b1r, w2, b2r, w3, b3r, wc, bcr = packed
    K1, K2 = w1.shape
    K3 = wc.shape[-1]

    # MultiIonReadout.forward: flatten the last two dims, cast to float32.
    y = x.reshape(x.shape[:-2] + (-1,)).astype(jnp.float32)      # (..., N, H*W)
    lead = y.shape[:-2]
    N = y.shape[-2]
    assert N * y.shape[-1] == K1, "input feature size does not match packed weights"
    N_c = K3 // N
    B = 1
    for d in lead:
        B *= d
    x2d = y.reshape(B, K1)                                       # free (row-major)

    # Batch tiling: no HBM padding pass.
    #   B <= tb : single block, TB == B (block == full dim, so any B is legal).
    #   B >  tb : balanced tile size (multiple of 8); a ragged last block is fine
    #             because rows are independent and out-of-bounds rows are dropped.
    if B <= tb:
        TB = B
    else:
        G = -(-B // tb)
        TB = min(_round_up(-(-B // G), 8), tb)
    grid = -(-B // TB)

    # VMEM budget: double-buffered x/out tiles + resident weights, with headroom.
    w_bytes = (w1.size + w2.size + w3.size + wc.size) * 2 \
        + (b1r.size + b2r.size + b3r.size + bcr.size) * 4
    tile_bytes = TB * K1 * 4 + TB * K3 * 4
    vmem_limit = int(min(max(2 * (tile_bytes + w_bytes) + (4 << 20), 16 << 20), 48 << 20))

    out = pl.pallas_call(
        _mir_kernel,
        out_shape=jax.ShapeDtypeStruct((B, K3), jnp.float32),
        grid_spec=pltpu.PrefetchScalarGridSpec(
            num_scalar_prefetch=0,
            grid=(grid,),
            in_specs=[
                pl.BlockSpec((TB, K1), lambda i: (i, 0)),        # x tile (pipelined, f32)
                pl.BlockSpec((K1, K2), lambda i: (0, 0)),        # weights: VMEM-resident
                pl.BlockSpec((1, K2), lambda i: (0, 0)),
                pl.BlockSpec((K2, K2), lambda i: (0, 0)),
                pl.BlockSpec((1, K2), lambda i: (0, 0)),
                pl.BlockSpec((K2, K2), lambda i: (0, 0)),
                pl.BlockSpec((1, K2), lambda i: (0, 0)),
                pl.BlockSpec((K2, K3), lambda i: (0, 0)),
                pl.BlockSpec((1, K3), lambda i: (0, 0)),
            ],
            out_specs=pl.BlockSpec((TB, K3), lambda i: (i, 0)),
        ),
        compiler_params=pltpu.CompilerParams(
            dimension_semantics=("parallel",),
            vmem_limit_bytes=vmem_limit,
        ),
    )(x2d, w1, b1r, w2, b2r, w3, b3r, wc, bcr)

    return out.reshape(*lead, N, N_c)


def _xavier_uniform(key, shape):
    # Matches torch.nn.init.xavier_uniform_ fan computation.
    if len(shape) == 2:
        fan_in, fan_out = shape[1], shape[0]
    else:
        receptive = 1
        for s in shape[2:]:
            receptive *= s
        fan_in, fan_out = shape[1] * receptive, shape[0] * receptive
    bound = math.sqrt(6.0 / (fan_in + fan_out))
    return jax.random.uniform(key, shape, jnp.float32, minval=-bound, maxval=bound)


def init_multi_ion_readout_params(key, N, N_i, N_o, N_c):
    ks = jax.random.split(key, 8)
    W1 = _xavier_uniform(ks[0], (N, N_i, N_o))
    b1 = _xavier_uniform(ks[1], (N, N_o))
    W2 = _xavier_uniform(ks[2], (N, N_o, N_o))
    b2 = _xavier_uniform(ks[3], (N, N_o))
    W3 = _xavier_uniform(ks[4], (N, N_o, N_o))
    b3 = _xavier_uniform(ks[5], (N, N_o))
    Wc = _xavier_uniform(ks[6], (N, N_o, N_c))
    bc = _xavier_uniform(ks[7], (N, N_c))
    return (W1, b1, W2, b2, W3, b3, Wc, bc)


def multi_ion_readout_reference(x, params, *, use_bf16=True):
    """Pure-JAX reference mirroring the PyTorch forward (optionally bf16 operands)."""
    W1, b1, W2, b2, W3, b3, Wc, bc = params
    h = x.reshape(x.shape[:-2] + (-1,)).astype(jnp.float32)      # (..., N, N_i)

    def cast(a):
        return a.astype(jnp.bfloat16) if use_bf16 else a

    for (W, b, act) in ((W1, b1, True), (W2, b2, True), (W3, b3, True), (Wc, bc, False)):
        h = jnp.einsum('nij,...ni->...nj', cast(W), cast(h),
                       preferred_element_type=jnp.float32) + b
        if act:
            h = jnp.maximum(h, 0.0)
    return h


if __name__ == "__main__":
    B, N, H, W = 2, 4, 16, 16          # x: (batch, ions, img_h, img_w)
    N_i, N_o, N_c = H * W, 32, 2       # encoder hidden 32, binary bright/dark logits

    key = jax.random.PRNGKey(0)
    k_params, k_x, k_x2 = jax.random.split(key, 3)
    params = init_multi_ion_readout_params(k_params, N, N_i, N_o, N_c)
    packed = pack_multi_ion_readout_params(params)   # one-time packing (not per forward)

    # Small batch: single block (TB == B, no padding).
    x = jax.random.normal(k_x, (B, N, H, W), jnp.float32)
    y = multi_ion_readout_forward(x, packed)
    y = jax.block_until_ready(y)
    assert y.shape == (B, N, N_c)

    y_ref_bf16 = multi_ion_readout_reference(x, params, use_bf16=True)
    y_ref_f32 = multi_ion_readout_reference(x, params, use_bf16=False)
    assert jnp.allclose(y, y_ref_bf16, atol=1e-3, rtol=1e-3), "mismatch vs bf16 reference"
    assert jnp.allclose(y, y_ref_f32, atol=5e-2, rtol=5e-2), "mismatch vs f32 reference"

    # Larger batch with a small tile to exercise multi-block grid + ragged last block.
    B2 = 20
    x2 = jax.random.normal(k_x2, (B2, N, H, W), jnp.float32)
    y2 = jax.block_until_ready(multi_ion_readout_forward(x2, packed, tb=8))
    y2_ref = multi_ion_readout_reference(x2, params, use_bf16=True)
    assert y2.shape == (B2, N, N_c)
    assert jnp.allclose(y2, y2_ref, atol=1e-3, rtol=1e-3), "mismatch on ragged-grid case"

    print("KERNEL_OK")
</pallas_src>

<mosaic_0001>
module attributes {stable_mosaic.version = 11 : i64} {
  func.func @_mir_kernel(%arg0: i32, %arg1: memref<2x1024xf32, #tpu.memory_space<vmem>>, %arg2: memref<1024x128xbf16, #tpu.memory_space<vmem>>, %arg3: memref<1x128xf32, #tpu.memory_space<vmem>>, %arg4: memref<128x128xbf16, #tpu.memory_space<vmem>>, %arg5: memref<1x128xf32, #tpu.memory_space<vmem>>, %arg6: memref<128x128xbf16, #tpu.memory_space<vmem>>, %arg7: memref<1x128xf32, #tpu.memory_space<vmem>>, %arg8: memref<128x8xbf16, #tpu.memory_space<vmem>>, %arg9: memref<1x8xf32, #tpu.memory_space<vmem>>, %arg10: memref<2x8xf32, #tpu.memory_space<vmem>>) attributes {dimension_semantics = [#tpu.dimension_semantics<parallel>], iteration_bounds = array<i64: 1>, scalar_prefetch = 0 : i64, scratch_operands = 0 : i64, tpu.core_type = #tpu.core_type<tc>, window_params = [{transform_indices = @transform_0, window_bounds = array<i64: 2, 1024>}, {pipeline_mode = #tpu.pipeline_mode<synchronous>, transform_indices = @transform_1, window_bounds = array<i64: 1024, 128>}, {pipeline_mode = #tpu.pipeline_mode<synchronous>, transform_indices = @transform_2, window_bounds = array<i64: 1, 128>}, {pipeline_mode = #tpu.pipeline_mode<synchronous>, transform_indices = @transform_3, window_bounds = array<i64: 128, 128>}, {pipeline_mode = #tpu.pipeline_mode<synchronous>, transform_indices = @transform_4, window_bounds = array<i64: 1, 128>}, {pipeline_mode = #tpu.pipeline_mode<synchronous>, transform_indices = @transform_5, window_bounds = array<i64: 128, 128>}, {pipeline_mode = #tpu.pipeline_mode<synchronous>, transform_indices = @transform_6, window_bounds = array<i64: 1, 128>}, {pipeline_mode = #tpu.pipeline_mode<synchronous>, transform_indices = @transform_7, window_bounds = array<i64: 128, 8>}, {pipeline_mode = #tpu.pipeline_mode<synchronous>, transform_indices = @transform_8, window_bounds = array<i64: 1, 8>}, {transform_indices = @transform_9, window_bounds = array<i64: 2, 8>}]} {
    %c0 = arith.constant 0 : index
    %c0_0 = arith.constant 0 : index
    %0 = vector.load %arg1[%c0, %c0_0] : memref<2x1024xf32, #tpu.memory_space<vmem>>, vector<2x1024xf32>
    %1 = arith.truncf %0 : vector<2x1024xf32> to vector<2x1024xbf16>
    %c0_1 = arith.constant 0 : index
    %c0_2 = arith.constant 0 : index
    %2 = vector.load %arg2[%c0_1, %c0_2] : memref<1024x128xbf16, #tpu.memory_space<vmem>>, vector<1024x128xbf16>
    %cst = arith.constant dense<0.000000e+00> : vector<2x128xf32>
    %3 = tpu.matmul %1, %2, %cst {dimension_numbers = #tpu.dot_dimension_numbers<[1], [0], [0], [1], [0, 0, 1, 1], [], []>} : vector<2x1024xbf16>, vector<1024x128xbf16>, vector<2x128xf32> -> vector<2x128xf32>
    %c0_3 = arith.constant 0 : index
    %c0_4 = arith.constant 0 : index
    %4 = vector.load %arg3[%c0_3, %c0_4] : memref<1x128xf32, #tpu.memory_space<vmem>>, vector<1x128xf32>
    %5 = vector.broadcast %4 : vector<1x128xf32> to vector<2x128xf32>
    %6 = arith.addf %3, %5 : vector<2x128xf32>
    %cst_5 = arith.constant 0.000000e+00 : f32
    %7 = vector.broadcast %cst_5 : f32 to vector<2x128xf32>
    %8 = arith.maximumf %6, %7 : vector<2x128xf32>
    %9 = arith.truncf %8 : vector<2x128xf32> to vector<2x128xbf16>
    %c0_6 = arith.constant 0 : index
    %c0_7 = arith.constant 0 : index
    %10 = vector.load %arg4[%c0_6, %c0_7] : memref<128x128xbf16, #tpu.memory_space<vmem>>, vector<128x128xbf16>
    %cst_8 = arith.constant dense<0.000000e+00> : vector<2x128xf32>
    %11 = tpu.matmul %9, %10, %cst_8 {dimension_numbers = #tpu.dot_dimension_numbers<[1], [0], [0], [1], [0, 0, 1, 1], [], []>} : vector<2x128xbf16>, vector<128x128xbf16>, vector<2x128xf32> -> vector<2x128xf32>
    %c0_9 = arith.constant 0 : index
    %c0_10 = arith.constant 0 : index
    %12 = vector.load %arg5[%c0_9, %c0_10] : memref<1x128xf32, #tpu.memory_space<vmem>>, vector<1x128xf32>
    %13 = vector.broadcast %12 : vector<1x128xf32> to vector<2x128xf32>
    %14 = arith.addf %11, %13 : vector<2x128xf32>
    %cst_11 = arith.constant 0.000000e+00 : f32
    %15 = vector.broadcast %cst_11 : f32 to vector<2x128xf32>
    %16 = arith.maximumf %14, %15 : vector<2x128xf32>
    %17 = arith.truncf %16 : vector<2x128xf32> to vector<2x128xbf16>
    %c0_12 = arith.constant 0 : index
    %c0_13 = arith.constant 0 : index
    %18 = vector.load %arg6[%c0_12, %c0_13] : memref<128x128xbf16, #tpu.memory_space<vmem>>, vector<128x128xbf16>
    %cst_14 = arith.constant dense<0.000000e+00> : vector<2x128xf32>
    %19 = tpu.matmul %17, %18, %cst_14 {dimension_numbers = #tpu.dot_dimension_numbers<[1], [0], [0], [1], [0, 0, 1, 1], [], []>} : vector<2x128xbf16>, vector<128x128xbf16>, vector<2x128xf32> -> vector<2x128xf32>
    %c0_15 = arith.constant 0 : index
    %c0_16 = arith.constant 0 : index
    %20 = vector.load %arg7[%c0_15, %c0_16] : memref<1x128xf32, #tpu.memory_space<vmem>>, vector<1x128xf32>
    %21 = vector.broadcast %20 : vector<1x128xf32> to vector<2x128xf32>
    %22 = arith.addf %19, %21 : vector<2x128xf32>
    %cst_17 = arith.constant 0.000000e+00 : f32
    %23 = vector.broadcast %cst_17 : f32 to vector<2x128xf32>
    %24 = arith.maximumf %22, %23 : vector<2x128xf32>
    %25 = arith.truncf %24 : vector<2x128xf32> to vector<2x128xbf16>
    %c0_18 = arith.constant 0 : index
    %c0_19 = arith.constant 0 : index
    %26 = vector.load %arg8[%c0_18, %c0_19] : memref<128x8xbf16, #tpu.memory_space<vmem>>, vector<128x8xbf16>
    %cst_20 = arith.constant dense<0.000000e+00> : vector<2x8xf32>
    %27 = tpu.matmul %25, %26, %cst_20 {dimension_numbers = #tpu.dot_dimension_numbers<[1], [0], [0], [1], [0, 0, 1, 1], [], []>} : vector<2x128xbf16>, vector<128x8xbf16>, vector<2x8xf32> -> vector<2x8xf32>
    %c0_21 = arith.constant 0 : index
    %c0_22 = arith.constant 0 : index
    %28 = vector.load %arg9[%c0_21, %c0_22] : memref<1x8xf32, #tpu.memory_space<vmem>>, vector<1x8xf32>
    %29 = vector.broadcast %28 : vector<1x8xf32> to vector<2x8xf32>
    %30 = arith.addf %27, %29 : vector<2x8xf32>
    %c0_23 = arith.constant 0 : index
    %c0_24 = arith.constant 0 : index
    %31 = vector.load %arg10[%c0_23, %c0_24] : memref<2x8xf32, #tpu.memory_space<vmem>>, vector<2x8xf32>
    tpu.vector_store %arg10[%c0_23, %c0_24], %30 {strides = array<i32>} : memref<2x8xf32, #tpu.memory_space<vmem>>, vector<2x8xf32>,
    return
  }
  func.func @transform_0(%arg0: i32) -> (i32, i32) {
    %c0_i32 = arith.constant 0 : i32
    %c0_i32_0 = arith.constant 0 : i32
    return %arg0, %c0_i32 : i32, i32
  }
  func.func @transform_1(%arg0: i32) -> (i32, i32) {
    %c0_i32 = arith.constant 0 : i32
    %c0_i32_0 = arith.constant 0 : i32
    %c0_i32_1 = arith.constant 0 : i32
    return %c0_i32, %c0_i32_0 : i32, i32
  }
  func.func @transform_2(%arg0: i32) -> (i32, i32) {
    %c0_i32 = arith.constant 0 : i32
    %c0_i32_0 = arith.constant 0 : i32
    %c0_i32_1 = arith.constant 0 : i32
    return %c0_i32, %c0_i32_0 : i32, i32
  }
  func.func @transform_3(%arg0: i32) -> (i32, i32) {
    %c0_i32 = arith.constant 0 : i32
    %c0_i32_0 = arith.constant 0 : i32
    %c0_i32_1 = arith.constant 0 : i32
    return %c0_i32, %c0_i32_0 : i32, i32
  }
  func.func @transform_4(%arg0: i32) -> (i32, i32) {
    %c0_i32 = arith.constant 0 : i32
    %c0_i32_0 = arith.constant 0 : i32
    %c0_i32_1 = arith.constant 0 : i32
    return %c0_i32, %c0_i32_0 : i32, i32
  }
  func.func @transform_5(%arg0: i32) -> (i32, i32) {
    %c0_i32 = arith.constant 0 : i32
    %c0_i32_0 = arith.constant 0 : i32
    %c0_i32_1 = arith.constant 0 : i32
    return %c0_i32, %c0_i32_0 : i32, i32
  }
  func.func @transform_6(%arg0: i32) -> (i32, i32) {
    %c0_i32 = arith.constant 0 : i32
    %c0_i32_0 = arith.constant 0 : i32
    %c0_i32_1 = arith.constant 0 : i32
    return %c0_i32, %c0_i32_0 : i32, i32
  }
  func.func @transform_7(%arg0: i32) -> (i32, i32) {
    %c0_i32 = arith.constant 0 : i32
    %c0_i32_0 = arith.constant 0 : i32
    %c0_i32_1 = arith.constant 0 : i32
    return %c0_i32, %c0_i32_0 : i32, i32
  }
  func.func @transform_8(%arg0: i32) -> (i32, i32) {
    %c0_i32 = arith.constant 0 : i32
    %c0_i32_0 = arith.constant 0 : i32
    %c0_i32_1 = arith.constant 0 : i32
    return %c0_i32, %c0_i32_0 : i32, i32
  }
  func.func @transform_9(%arg0: i32) -> (i32, i32) {
    %c0_i32 = arith.constant 0 : i32
    %c0_i32_0 = arith.constant 0 : i32
    return %arg0, %c0_i32 : i32, i32
  }
}

</mosaic_0001>

<llo_original>
// kernel: multi_ion_readout_forward.1
$region0: #{multi_ion_readout_forward.1}
  #allocation0 [shape = 'u32[]', space=smem, size = 0x4, offset = 0x4, fixed_abs, tag = 'smem constant byte address 0x4 - core index']
  #allocation1 [shape = 'u32[144,128]{1,0:T(1,128)}', space=vmem, size = 0x12000, scoped, tag = 'internal scratch']
  %s0 = inlined_call_operand.vmem [shape: f32[2,1024], index: 0, kind: input, shape index: {}]
  %s1 = inlined_call_operand.hbm [shape: bf16[1024,128], index: 1, kind: input, shape index: {}]
  %s2 = inlined_call_operand.vmem [shape: f32[1,128], index: 2, kind: input, shape index: {}]
  %s3 = inlined_call_operand.vmem [shape: bf16[128,128], index: 3, kind: input, shape index: {}]
  %s4 = inlined_call_operand.vmem [shape: f32[1,128], index: 4, kind: input, shape index: {}]
  %s5 = inlined_call_operand.vmem [shape: bf16[128,128], index: 5, kind: input, shape index: {}]
  %s6 = inlined_call_operand.vmem [shape: f32[1,128], index: 6, kind: input, shape index: {}]
  %s7 = inlined_call_operand.vmem [shape: bf16[128,8], index: 7, kind: input, shape index: {}]
  %s8 = inlined_call_operand.vmem [shape: f32[1,8], index: 8, kind: input, shape index: {}]
  %s9 = inlined_call_operand.vmem [shape: f32[2,8], index: 9, kind: output, shape index: {}]
  %s10 = sld [smem:[#allocation0]]
  $region50: #{multi_ion_readout_forward.1} parent=0
    _
  %s12 = ssub.s32 1, %s10
  %s13 = scalar_select 0, %s12, %s10
  $region1: #{multi_ion_readout_forward.1} parent=0
    #allocation2 [shape = 'u8[262144]{0}', space=vmem, size = 0x40000, scoped, tag = 'input window, operand 1, single buffered']
    #allocation3 [shape = 's32[1]{0}', space=sflag, size = 0x4, scoped, tag = 'scoped memory for multi_ion_readout_forward.1']
    %14 = vsyncpa [#allocation3], 0
    // Predicated region
    $region2: #{multi_ion_readout_forward.1} parent=1 // pred_check
      _
    $region3: #{multi_ion_readout_forward.1} parent=1 // pred_check_branch
      %16 = sbr.rel (0) target = $region5
    $region4: #{multi_ion_readout_forward.1} parent=1 // pred_region
      _
    $region5: #{multi_ion_readout_forward.1} parent=1 // pred_fallthru
      _
    // Predicated region
    $region6: #{multi_ion_readout_forward.1} parent=1 // pred_check
      _
    $region7: #{multi_ion_readout_forward.1} parent=1 // pred_check_branch
      %18 = sbr.rel (0) target = $region9
    $region8: #{multi_ion_readout_forward.1} parent=1 // pred_region
      %s20 = ssub.s32 8192, 8192
      %21 = vsyncadd [#allocation3], %s20
      %s22 = sshll.u32 [#allocation2], 4
      %s23 = int_to_ptr.vmem [resolvable:$true] %s22
      %28 = dma.hbm_to_vmem [thread:$0]  %s1, 8192, %s23, [#allocation3], 64, 64, 4
    $region9: #{multi_ion_readout_forward.1} parent=1 // pred_fallthru
      _
    // Predicated region
    $region10: #{multi_ion_readout_forward.1} parent=1 // pred_check
      _
    $region11: #{multi_ion_readout_forward.1} parent=1 // pred_check_branch
      %30 = sbr.rel (0) target = $region13
    $region12: #{multi_ion_readout_forward.1} parent=1 // pred_region
      _
    $region13: #{multi_ion_readout_forward.1} parent=1 // pred_fallthru
      _
    // Predicated region
    $region14: #{multi_ion_readout_forward.1} parent=1 // pred_check
      _
    $region15: #{multi_ion_readout_forward.1} parent=1 // pred_check_branch
      %32 = sbr.rel (0) target = $region17
    $region16: #{multi_ion_readout_forward.1} parent=1 // pred_region
      _
    $region17: #{multi_ion_readout_forward.1} parent=1 // pred_fallthru
      _
    // Predicated region
    $region18: #{multi_ion_readout_forward.1} parent=1 // pred_check
      _
    $region19: #{multi_ion_readout_forward.1} parent=1 // pred_check_branch
      %34 = sbr.rel (0) target = $region21
    $region20: #{multi_ion_readout_forward.1} parent=1 // pred_region
      _
    $region21: #{multi_ion_readout_forward.1} parent=1 // pred_fallthru
      _
    // Predicated region
    $region22: #{multi_ion_readout_forward.1} parent=1 // pred_check
      _
    $region23: #{multi_ion_readout_forward.1} parent=1 // pred_check_branch
      %36 = sbr.rel (0) target = $region25
    $region24: #{multi_ion_readout_forward.1} parent=1 // pred_region
      _
    $region25: #{multi_ion_readout_forward.1} parent=1 // pred_fallthru
      _
    // Predicated region
    $region26: #{multi_ion_readout_forward.1} parent=1 // pred_check
      _
    $region27: #{multi_ion_readout_forward.1} parent=1 // pred_check_branch
      %38 = sbr.rel (0) target = $region29
    $region28: #{multi_ion_readout_forward.1} parent=1 // pred_region
      _
    $region29: #{multi_ion_readout_forward.1} parent=1 // pred_fallthru
      _
    // Predicated region
    $region30: #{multi_ion_readout_forward.1} parent=1 // pred_check
      _
    $region31: #{multi_ion_readout_forward.1} parent=1 // pred_check_branch
      %40 = sbr.rel (0) target = $region33
    $region32: #{multi_ion_readout_forward.1} parent=1 // pred_region
      _
    $region33: #{multi_ion_readout_forward.1} parent=1 // pred_fallthru
      _
    // Predicated region
    $region34: #{multi_ion_readout_forward.1} parent=1 // pred_check
      _
    $region35: #{multi_ion_readout_forward.1} parent=1 // pred_check_branch
      %42 = sbr.rel (0) target = $region37
    $region36: #{multi_ion_readout_forward.1} parent=1 // pred_region
      _
    $region37: #{multi_ion_readout_forward.1} parent=1 // pred_fallthru
      _
    // Predicated region
    $region38: #{multi_ion_readout_forward.1} parent=1 // pred_check
      _
    $region39: #{multi_ion_readout_forward.1} parent=1 // pred_check_branch
      %44 = sbr.rel (0) target = $region41
    $region40: #{multi_ion_readout_forward.1} parent=1 // pred_region
      %45 = dma.done [#allocation3], 8192
    $region41: #{multi_ion_readout_forward.1} parent=1 // pred_fallthru
      _
    %v47 = vld [vmem:[%s0] sm:$0xff]
    %v48 = vld [vmem:[%s0 + $0x8] sm:$0xff]
    %v51 = vcombine.high %v47, %v47
    %v53 = vunpack.c.l.s4 1983009808
    %v54 = vunpack.c.0.s8 %v53
    %v55 = vlaneseq
    %v56 = vshrl.u32 %v55, 7
    %v57 = vsub.s32 %v54, %v56
    %v58 = vrot.slane %v47, %v57
    %v60 = vunpack.c.l.s4 1983009808
    %v61 = vunpack.c.0.s8 %v60
    %v62 = vlaneseq
    %v63 = vshrl.u32 %v62, 7
    %v64 = vsub.s32 %v61, %v63
    %v65 = vrot.slane %v51, %v64
    %v66 = vcombine.high %v58, %v58
    %v67 = vcombine.high %v65, %v65
    %v68 = vcombine.high %v48, %v48
    %v70 = vunpack.c.l.s4 1983009808
    %v71 = vunpack.c.0.s8 %v70
    %v72 = vlaneseq
    %v73 = vshrl.u32 %v72, 7
    %v74 = vsub.s32 %v71, %v73
    %v75 = vrot.slane %v48, %v74
    %v77 = vunpack.c.l.s4 1983009808
    %v78 = vunpack.c.0.s8 %v77
    %v79 = vlaneseq
    %v80 = vshrl.u32 %v79, 7
    %v81 = vsub.s32 %v78, %v80
    %v82 = vrot.slane %v68, %v81
    %v83 = vcombine.high %v75, %v75
    %v84 = vcombine.high %v82, %v82
    %v93 = vpack.c.bf16 %v58, %v58
    %v94 = vpack.c.bf16 %v66, %v66
    %v95 = vpack.c.bf16 %v65, %v65
    %v96 = vpack.c.bf16 %v67, %v67
    %v97 = vpack.c.bf16 %v75, %v75
    %v98 = vpack.c.bf16 %v83, %v83
    %v99 = vpack.c.bf16 %v82, %v82
    %v100 = vpack.c.bf16 %v84, %v84
    %v101 = vld [vmem:[#allocation2] sm:$0xf]
    %v102 = vld [vmem:[#allocation2 + $0x4] sm:$0xf]
    %v103 = vld [vmem:[#allocation2 + $0x8] sm:$0xf]
    %v104 = vld [vmem:[#allocation2 + $0xc] sm:$0xf]
    %v105 = vld [vmem:[#allocation2 + $0x10] sm:$0xf]
    %v106 = vld [vmem:[#allocation2 + $0x14] sm:$0xf]
    %v107 = vld [vmem:[#allocation2 + $0x18] sm:$0xf]
    %v108 = vld [vmem:[#allocation2 + $0x1c] sm:$0xf]
    %v109 = vld [vmem:[#allocation2 + $0x20] sm:$0xf]
    %v110 = vld [vmem:[#allocation2 + $0x24] sm:$0xf]
    %v111 = vld [vmem:[#allocation2 + $0x28] sm:$0xf]
    %v112 = vld [vmem:[#allocation2 + $0x2c] sm:$0xf]
    %v113 = vld [vmem:[#allocation2 + $0x30] sm:$0xf]
    %v114 = vld [vmem:[#allocation2 + $0x34] sm:$0xf]
    %v115 = vld [vmem:[#allocation2 + $0x38] sm:$0xf]
    %v116 = vld [vmem:[#allocation2 + $0x3c] sm:$0xf]
    %v117 = vld [vmem:[#allocation2 + $0x40] sm:$0xf]
    %v118 = vld [vmem:[#allocation2 + $0x44] sm:$0xf]
    %v119 = vld [vmem:[#allocation2 + $0x48] sm:$0xf]
    %v120 = vld [vmem:[#allocation2 + $0x4c] sm:$0xf]
    %v121 = vld [vmem:[#allocation2 + $0x50] sm:$0xf]
    %v122 = vld [vmem:[#allocation2 + $0x54] sm:$0xf]
    %v123 = vld [vmem:[#allocation2 + $0x58] sm:$0xf]
    %v124 = vld [vmem:[#allocation2 + $0x5c] sm:$0xf]
    %v125 = vld [vmem:[#allocation2 + $0x60] sm:$0xf]
    %v126 = vld [vmem:[#allocation2 + $0x64] sm:$0xf]
    %v127 = vld [vmem:[#allocation2 + $0x68] sm:$0xf]
    %v128 = vld [vmem:[#allocation2 + $0x6c] sm:$0xf]
    %v129 = vld [vmem:[#allocation2 + $0x70] sm:$0xf]
    %v130 = vld [vmem:[#allocation2 + $0x74] sm:$0xf]
    %v131 = vld [vmem:[#allocation2 + $0x78] sm:$0xf]
    %v132 = vld [vmem:[#allocation2 + $0x7c] sm:$0xf]
    %v133 = vld [vmem:[#allocation2 + $0x80] sm:$0xf]
    %v134 = vld [vmem:[#allocation2 + $0x84] sm:$0xf]
    %v135 = vld [vmem:[#allocation2 + $0x88] sm:$0xf]
    %v136 = vld [vmem:[#allocation2 + $0x8c] sm:$0xf]
    %v137 = vld [vmem:[#allocation2 + $0x90] sm:$0xf]
    %v138 = vld [vmem:[#allocation2 + $0x94] sm:$0xf]
    %v139 = vld [vmem:[#allocation2 + $0x98] sm:$0xf]
    %v140 = vld [vmem:[#allocation2 + $0x9c] sm:$0xf]
    %v141 = vld [vmem:[#allocation2 + $0xa0] sm:$0xf]
    %v142 = vld [vmem:[#allocation2 + $0xa4] sm:$0xf]
    %v143 = vld [vmem:[#allocation2 + $0xa8] sm:$0xf]
    %v144 = vld [vmem:[#allocation2 + $0xac] sm:$0xf]
    %v145 = vld [vmem:[#allocation2 + $0xb0] sm:$0xf]
    %v146 = vld [vmem:[#allocation2 + $0xb4] sm:$0xf]
    %v147 = vld [vmem:[#allocation2 + $0xb8] sm:$0xf]
    %v148 = vld [vmem:[#allocation2 + $0xbc] sm:$0xf]
    %v149 = vld [vmem:[#allocation2 + $0xc0] sm:$0xf]
    %v150 = vld [vmem:[#allocation2 + $0xc4] sm:$0xf]
    %v151 = vld [vmem:[#allocation2 + $0xc8] sm:$0xf]
    %v152 = vld [vmem:[#allocation2 + $0xcc] sm:$0xf]
    %v153 = vld [vmem:[#allocation2 + $0xd0] sm:$0xf]
    %v154 = vld [vmem:[#allocation2 + $0xd4] sm:$0xf]
    %v155 = vld [vmem:[#allocation2 + $0xd8] sm:$0xf]
    %v156 = vld [vmem:[#allocation2 + $0xdc] sm:$0xf]
    %v157 = vld [vmem:[#allocation2 + $0xe0] sm:$0xf]
    %v158 = vld [vmem:[#allocation2 + $0xe4] sm:$0xf]
    %v159 = vld [vmem:[#allocation2 + $0xe8] sm:$0xf]
    %v160 = vld [vmem:[#allocation2 + $0xec] sm:$0xf]
    %v161 = vld [vmem:[#allocation2 + $0xf0] sm:$0xf]
    %v162 = vld [vmem:[#allocation2 + $0xf4] sm:$0xf]
    %v163 = vld [vmem:[#allocation2 + $0xf8] sm:$0xf]
    %v164 = vld [vmem:[#allocation2 + $0xfc] sm:$0xf]
    %v165 = vld [vmem:[#allocation2 + $0x100] sm:$0xf]
    %v166 = vld [vmem:[#allocation2 + $0x104] sm:$0xf]
    %v167 = vld [vmem:[#allocation2 + $0x108] sm:$0xf]
    %v168 = vld [vmem:[#allocation2 + $0x10c] sm:$0xf]
    %v169 = vld [vmem:[#allocation2 + $0x110] sm:$0xf]
    %v170 = vld [vmem:[#allocation2 + $0x114] sm:$0xf]
    %v171 = vld [vmem:[#allocation2 + $0x118] sm:$0xf]
    %v172 = vld [vmem:[#allocation2 + $0x11c] sm:$0xf]
    %v173 = vld [vmem:[#allocation2 + $0x120] sm:$0xf]
    %v174 = vld [vmem:[#allocation2 + $0x124] sm:$0xf]
    %v175 = vld [vmem:[#allocation2 + $0x128] sm:$0xf]
    %v176 = vld [vmem:[#allocation2 + $0x12c] sm:$0xf]
    %v177 = vld [vmem:[#allocation2 + $0x130] sm:$0xf]
    %v178 = vld [vmem:[#allocation2 + $0x134] sm:$0xf]
    %v179 = vld [vmem:[#allocation2 + $0x138] sm:$0xf]
    %v180 = vld [vmem:[#allocation2 + $0x13c] sm:$0xf]
    %v181 = vld [vmem:[#allocation2 + $0x140] sm:$0xf]
    %v182 = vld [vmem:[#allocation2 + $0x144] sm:$0xf]
    %v183 = vld [vmem:[#allocation2 + $0x148] sm:$0xf]
    %v184 = vld [vmem:[#allocation2 + $0x14c] sm:$0xf]
    %v185 = vld [vmem:[#allocation2 + $0x150] sm:$0xf]
    %v186 = vld [vmem:[#allocation2 + $0x154] sm:$0xf]
    %v187 = vld [vmem:[#allocation2 + $0x158] sm:$0xf]
    %v188 = vld [vmem:[#allocation2 + $0x15c] sm:$0xf]
    %v189 = vld [vmem:[#allocation2 + $0x160] sm:$0xf]
    %v190 = vld [vmem:[#allocation2 + $0x164] sm:$0xf]
    %v191 = vld [vmem:[#allocation2 + $0x168] sm:$0xf]
    %v192 = vld [vmem:[#allocation2 + $0x16c] sm:$0xf]
    %v193 = vld [vmem:[#allocation2 + $0x170] sm:$0xf]
    %v194 = vld [vmem:[#allocation2 + $0x174] sm:$0xf]
    %v195 = vld [vmem:[#allocation2 + $0x178] sm:$0xf]
    %v196 = vld [vmem:[#allocation2 + $0x17c] sm:$0xf]
    %v197 = vld [vmem:[#allocation2 + $0x180] sm:$0xf]
    %v198 = vld [vmem:[#allocation2 + $0x184] sm:$0xf]
    %v199 = vld [vmem:[#allocation2 + $0x188] sm:$0xf]
    %v200 = vld [vmem:[#allocation2 + $0x18c] sm:$0xf]
    %v201 = vld [vmem:[#allocation2 + $0x190] sm:$0xf]
    %v202 = vld [vmem:[#allocation2 + $0x194] sm:$0xf]
    %v203 = vld [vmem:[#allocation2 + $0x198] sm:$0xf]
    %v204 = vld [vmem:[#allocation2 + $0x19c] sm:$0xf]
    %v205 = vld [vmem:[#allocation2 + $0x1a0] sm:$0xf]
    %v206 = vld [vmem:[#allocation2 + $0x1a4] sm:$0xf]
    %v207 = vld [vmem:[#allocation2 + $0x1a8] sm:$0xf]
    %v208 = vld [vmem:[#allocation2 + $0x1ac] sm:$0xf]
    %v209 = vld [vmem:[#allocation2 + $0x1b0] sm:$0xf]
    %v210 = vld [vmem:[#allocation2 + $0x1b4] sm:$0xf]
    %v211 = vld [vmem:[#allocation2 + $0x1b8] sm:$0xf]
    %v212 = vld [vmem:[#allocation2 + $0x1bc] sm:$0xf]
    %v213 = vld [vmem:[#allocation2 + $0x1c0] sm:$0xf]
    %v214 = vld [vmem:[#allocation2 + $0x1c4] sm:$0xf]
    %v215 = vld [vmem:[#allocation2 + $0x1c8] sm:$0xf]
    %v216 = vld [vmem:[#allocation2 + $0x1cc] sm:$0xf]
    %v217 = vld [vmem:[#allocation2 + $0x1d0] sm:$0xf]
    %v218 = vld [vmem:[#allocation2 + $0x1d4] sm:$0xf]
    %v219 = vld [vmem:[#allocation2 + $0x1d8] sm:$0xf]
    %v220 = vld [vmem:[#allocation2 + $0x1dc] sm:$0xf]
    %v221 = vld [vmem:[#allocation2 + $0x1e0] sm:$0xf]
    %v222 = vld [vmem:[#allocation2 + $0x1e4] sm:$0xf]
    %v223 = vld [vmem:[#allocation2 + $0x1e8] sm:$0xf]
    %v224 = vld [vmem:[#allocation2 + $0x1ec] sm:$0xf]
    %v225 = vld [vmem:[#allocation2 + $0x1f0] sm:$0xf]
    %v226 = vld [vmem:[#allocation2 + $0x1f4] sm:$0xf]
    %v227 = vld [vmem:[#allocation2 + $0x1f8] sm:$0xf]
    %v228 = vld [vmem:[#allocation2 + $0x1fc] sm:$0xf]
    %v229 = vld [vmem:[%s2] sm:$0x1]
    %v231 = vlaneseq
    %v232 = vshrl.u32 %v231, 7
    %v233 = vsub.s32 0, %v232
    %v234 = vrot.slane %v229, %v233
    %v364 = vunpack.c.l.b16 %v101
    %v365 = vunpack.c.l.b16 %v102
    %v366 = vunpack.c.l.b16 %v103
    %v367 = vunpack.c.l.b16 %v104
    %v368 = vunpack.c.l.b16 %v105
    %v369 = vunpack.c.l.b16 %v106
    %v370 = vunpack.c.l.b16 %v107
    %v371 = vunpack.c.l.b16 %v108
    %v372 = vunpack.c.l.b16 %v109
    %v373 = vunpack.c.l.b16 %v110
    %v374 = vunpack.c.l.b16 %v111
    %v375 = vunpack.c.l.b16 %v112
    %v376 = vunpack.c.l.b16 %v113
    %v377 = vunpack.c.l.b16 %v114
    %v378 = vunpack.c.l.b16 %v115
    %v379 = vunpack.c.l.b16 %v116
    %v380 = vunpack.c.l.b16 %v117
    %v381 = vunpack.c.l.b16 %v118
    %v382 = vunpack.c.l.b16 %v119
    %v383 = vunpack.c.l.b16 %v120
    %v384 = vunpack.c.l.b16 %v121
    %v385 = vunpack.c.l.b16 %v122
    %v386 = vunpack.c.l.b16 %v123
    %v387 = vunpack.c.l.b16 %v124
    %v388 = vunpack.c.l.b16 %v125
    %v389 = vunpack.c.l.b16 %v126
    %v390 = vunpack.c.l.b16 %v127
    %v391 = vunpack.c.l.b16 %v128
    %v392 = vunpack.c.l.b16 %v129
    %v393 = vunpack.c.l.b16 %v130
    %v394 = vunpack.c.l.b16 %v131
    %v395 = vunpack.c.l.b16 %v132
    %v396 = vunpack.c.l.b16 %v133
    %v397 = vunpack.c.l.b16 %v134
    %v398 = vunpack.c.l.b16 %v135
    %v399 = vunpack.c.l.b16 %v136
    %v400 = vunpack.c.l.b16 %v137
    %v401 = vunpack.c.l.b16 %v138
    %v402 = vunpack.c.l.b16 %v139
    %v403 = vunpack.c.l.b16 %v140
    %v404 = vunpack.c.l.b16 %v141
    %v405 = vunpack.c.l.b16 %v142
    %v406 = vunpack.c.l.b16 %v143
    %v407 = vunpack.c.l.b16 %v144
    %v408 = vunpack.c.l.b16 %v145
    %v409 = vunpack.c.l.b16 %v146
    %v410 = vunpack.c.l.b16 %v147
    %v411 = vunpack.c.l.b16 %v148
    %v412 = vunpack.c.l.b16 %v149
    %v413 = vunpack.c.l.b16 %v150
    %v414 = vunpack.c.l.b16 %v151
    %v415 = vunpack.c.l.b16 %v152
    %v416 = vunpack.c.l.b16 %v153
    %v417 = vunpack.c.l.b16 %v154
    %v418 = vunpack.c.l.b16 %v155
    %v419 = vunpack.c.l.b16 %v156
    %v420 = vunpack.c.l.b16 %v157
    %v421 = vunpack.c.l.b16 %v158
    %v422 = vunpack.c.l.b16 %v159
    %v423 = vunpack.c.l.b16 %v160
    %v424 = vunpack.c.l.b16 %v161
    %v425 = vunpack.c.l.b16 %v162
    %v426 = vunpack.c.l.b16 %v163
    %v427 = vunpack.c.l.b16 %v164
    %v428 = vunpack.c.l.b16 %v165
    %v429 = vunpack.c.l.b16 %v166
    %v430 = vunpack.c.l.b16 %v167
    %v431 = vunpack.c.l.b16 %v168
    %v432 = vunpack.c.l.b16 %v169
    %v433 = vunpack.c.l.b16 %v170
    %v434 = vunpack.c.l.b16 %v171
    %v435 = vunpack.c.l.b16 %v172
    %v436 = vunpack.c.l.b16 %v173
    %v437 = vunpack.c.l.b16 %v174
    %v438 = vunpack.c.l.b16 %v175
    %v439 = vunpack.c.l.b16 %v176
    %v440 = vunpack.c.l.b16 %v177
    %v441 = vunpack.c.l.b16 %v178
    %v442 = vunpack.c.l.b16 %v179
    %v443 = vunpack.c.l.b16 %v180
    %v444 = vunpack.c.l.b16 %v181
    %v445 = vunpack.c.l.b16 %v182
    %v446 = vunpack.c.l.b16 %v183
    %v447 = vunpack.c.l.b16 %v184
    %v448 = vunpack.c.l.b16 %v185
    %v449 = vunpack.c.l.b16 %v186
    %v450 = vunpack.c.l.b16 %v187
    %v451 = vunpack.c.l.b16 %v188
    %v452 = vunpack.c.l.b16 %v189
    %v453 = vunpack.c.l.b16 %v190
    %v454 = vunpack.c.l.b16 %v191
    %v455 = vunpack.c.l.b16 %v192
    %v456 = vunpack.c.l.b16 %v193
    %v457 = vunpack.c.l.b16 %v194
    %v458 = vunpack.c.l.b16 %v195
    %v459 = vunpack.c.l.b16 %v196
    %v460 = vunpack.c.l.b16 %v197
    %v461 = vunpack.c.l.b16 %v198
    %v462 = vunpack.c.l.b16 %v199
    %v463 = vunpack.c.l.b16 %v200
    %v464 = vunpack.c.l.b16 %v201
    %v465 = vunpack.c.l.b16 %v202
    %v466 = vunpack.c.l.b16 %v203
    %v467 = vunpack.c.l.b16 %v204
    %v468 = vunpack.c.l.b16 %v205
    %v469 = vunpack.c.l.b16 %v206
    %v470 = vunpack.c.l.b16 %v207
    %v471 = vunpack.c.l.b16 %v208
    %v472 = vunpack.c.l.b16 %v209
    %v473 = vunpack.c.l.b16 %v210
    %v474 = vunpack.c.l.b16 %v211
    %v475 = vunpack.c.l.b16 %v212
    %v476 = vunpack.c.l.b16 %v213
    %v477 = vunpack.c.l.b16 %v214
    %v478 = vunpack.c.l.b16 %v215
    %v479 = vunpack.c.l.b16 %v216
    %v480 = vunpack.c.l.b16 %v217
    %v481 = vunpack.c.l.b16 %v218
    %v482 = vunpack.c.l.b16 %v219
    %v483 = vunpack.c.l.b16 %v220
    %v484 = vunpack.c.l.b16 %v221
    %v485 = vunpack.c.l.b16 %v222
    %v486 = vunpack.c.l.b16 %v223
    %v487 = vunpack.c.l.b16 %v224
    %v488 = vunpack.c.l.b16 %v225
    %v489 = vunpack.c.l.b16 %v226
    %v490 = vunpack.c.l.b16 %v227
    %v491 = vunpack.c.l.b16 %v228
    %v492 = vpack.c.b16 %v365, %v364
    %v493 = vpack.c.b16 %v367, %v366
    %v494 = vpack.c.b16 %v369, %v368
    %v495 = vpack.c.b16 %v371, %v370
    %v496 = vpack.c.b16 %v373, %v372
    %v497 = vpack.c.b16 %v375, %v374
    %v498 = vpack.c.b16 %v377, %v376
    %v499 = vpack.c.b16 %v379, %v378
    %v500 = vpack.c.b16 %v381, %v380
    %v501 = vpack.c.b16 %v383, %v382
    %v502 = vpack.c.b16 %v385, %v384
    %v503 = vpack.c.b16 %v387, %v386
    %v504 = vpack.c.b16 %v389, %v388
    %v505 = vpack.c.b16 %v391, %v390
    %v506 = vpack.c.b16 %v393, %v392
    %v507 = vpack.c.b16 %v395, %v394
    %v508 = vpack.c.b16 %v397, %v396
    %v509 = vpack.c.b16 %v399, %v398
    %v510 = vpack.c.b16 %v401, %v400
    %v511 = vpack.c.b16 %v403, %v402
    %v512 = vpack.c.b16 %v405, %v404
    %v513 = vpack.c.b16 %v407, %v406
    %v514 = vpack.c.b16 %v409, %v408
    %v515 = vpack.c.b16 %v411, %v410
    %v516 = vpack.c.b16 %v413, %v412
    %v517 = vpack.c.b16 %v415, %v414
    %v518 = vpack.c.b16 %v417, %v416
    %v519 = vpack.c.b16 %v419, %v418
    %v520 = vpack.c.b16 %v421, %v420
    %v521 = vpack.c.b16 %v423, %v422
    %v522 = vpack.c.b16 %v425, %v424
    %v523 = vpack.c.b16 %v427, %v426
    %v524 = vpack.c.b16 %v429, %v428
    %v525 = vpack.c.b16 %v431, %v430
    %v526 = vpack.c.b16 %v433, %v432
    %v527 = vpack.c.b16 %v435, %v434
    %v528 = vpack.c.b16 %v437, %v436
    %v529 = vpack.c.b16 %v439, %v438
    %v530 = vpack.c.b16 %v441, %v440
    %v531 = vpack.c.b16 %v443, %v442
    %v532 = vpack.c.b16 %v445, %v444
    %v533 = vpack.c.b16 %v447, %v446
    %v534 = vpack.c.b16 %v449, %v448
    %v535 = vpack.c.b16 %v451, %v450
    %v536 = vpack.c.b16 %v453, %v452
    %v537 = vpack.c.b16 %v455, %v454
    %v538 = vpack.c.b16 %v457, %v456
    %v539 = vpack.c.b16 %v459, %v458
    %v540 = vpack.c.b16 %v461, %v460
    %v541 = vpack.c.b16 %v463, %v462
    %v542 = vpack.c.b16 %v465, %v464
    %v543 = vpack.c.b16 %v467, %v466
    %v544 = vpack.c.b16 %v469, %v468
    %v545 = vpack.c.b16 %v471, %v470
    %v546 = vpack.c.b16 %v473, %v472
    %v547 = vpack.c.b16 %v475, %v474
    %v548 = vpack.c.b16 %v477, %v476
    %v549 = vpack.c.b16 %v479, %v478
    %v550 = vpack.c.b16 %v481, %v480
    %v551 = vpack.c.b16 %v483, %v482
    %v552 = vpack.c.b16 %v485, %v484
    %v553 = vpack.c.b16 %v487, %v486
    %v554 = vpack.c.b16 %v489, %v488
    %v555 = vpack.c.b16 %v491, %v490
    %620 = vmatprep.subr.bf16.mxu0 0
    %621 = vmatpush1.bf16.msra.mxu0 %v499
    %622 = vmatprep.subr.bf16.mxu0 0
    %623 = vmatpush1.bf16.msra.mxu0 %v498
    %624 = vmatprep.subr.bf16.mxu0 0
    %625 = vmatpush1.bf16.msra.mxu0 %v497
    %626 = vmatprep.subr.bf16.mxu0 0
    %627 = vmatpush1.bf16.msra.mxu0 %v496
    %628 = vmatprep.subr.bf16.mxu0 0
    %629 = vmatpush1.bf16.msra.mxu0 %v495
    %630 = vmatprep.subr.bf16.mxu0 0
    %631 = vmatpush1.bf16.msra.mxu0 %v494
    %632 = vmatprep.subr.bf16.mxu0 0
    %633 = vmatpush1.bf16.msra.mxu0 %v493
    %634 = vmatprep.subr.bf16.mxu0 0
    %635 = vmatpush1.bf16.msra.mxu0 %v492
    %636 = vmatprep.subr.bf16.mxu0 0
    %637 = vmatpush2.bf16.msra.mxu0 %v507
    %638 = vmatprep.subr.bf16.mxu0 0
    %639 = vmatpush2.bf16.msra.mxu0 %v506
    %640 = vmatprep.subr.bf16.mxu0 0
    %641 = vmatpush2.bf16.msra.mxu0 %v505
    %642 = vmatprep.subr.bf16.mxu0 0
    %643 = vmatpush2.bf16.msra.mxu0 %v504
    %644 = vmatprep.subr.bf16.mxu0 0
    %645 = vmatpush2.bf16.msra.mxu0 %v503
    %646 = vmatprep.subr.bf16.mxu0 0
    %647 = vmatpush2.bf16.msra.mxu0 %v502
    %648 = vmatprep.subr.bf16.mxu0 0
    %649 = vmatpush2.bf16.msra.mxu0 %v501
    %650 = vmatprep.subr.bf16.mxu0 0
    %651 = vmatpush2.bf16.msra.mxu0 %v500
    %652 = vmatprep.mubr.bf16.mxu0 %v94
    %653 = vmatmul.mubr.bf16.gmra.mxu0 %v93
    %v654 = vpop.f32.mrf.mxu0
    %v655 = vadd.f32 %v234, %v654
    %v656 = vpop.f32.mrf.mxu0
    %v657 = vpop.f32.mrf.mxu0
    %v658 = vpop.f32.mrf.mxu0
    %659 = vdwg.mxu0
    %660 = vmatprep.subr.bf16.mxu0 0
    %661 = vmatpush1.bf16.msra.mxu0 %v515
    %662 = vmatprep.subr.bf16.mxu0 0
    %663 = vmatpush1.bf16.msra.mxu0 %v514
    %664 = vmatprep.subr.bf16.mxu0 0
    %665 = vmatpush1.bf16.msra.mxu0 %v513
    %666 = vmatprep.subr.bf16.mxu0 0
    %667 = vmatpush1.bf16.msra.mxu0 %v512
    %668 = vmatprep.subr.bf16.mxu0 0
    %669 = vmatpush1.bf16.msra.mxu0 %v511
    %670 = vmatprep.subr.bf16.mxu0 0
    %671 = vmatpush1.bf16.msra.mxu0 %v510
    %672 = vmatprep.subr.bf16.mxu0 0
    %673 = vmatpush1.bf16.msra.mxu0 %v509
    %674 = vmatprep.subr.bf16.mxu0 0
    %675 = vmatpush1.bf16.msra.mxu0 %v508
    %676 = vmatprep.subr.bf16.mxu0 0
    %677 = vmatpush2.bf16.msra.mxu0 %v523
    %678 = vmatprep.subr.bf16.mxu0 0
    %679 = vmatpush2.bf16.msra.mxu0 %v522
    %680 = vmatprep.subr.bf16.mxu0 0
    %681 = vmatpush2.bf16.msra.mxu0 %v521
    %682 = vmatprep.subr.bf16.mxu0 0
    %683 = vmatpush2.bf16.msra.mxu0 %v520
    %684 = vmatprep.subr.bf16.mxu0 0
    %685 = vmatpush2.bf16.msra.mxu0 %v519
    %686 = vmatprep.subr.bf16.mxu0 0
    %687 = vmatpush2.bf16.msra.mxu0 %v518
    %688 = vmatprep.subr.bf16.mxu0 0
    %689 = vmatpush2.bf16.msra.mxu0 %v517
    %690 = vmatprep.subr.bf16.mxu0 0
    %691 = vmatpush2.bf16.msra.mxu0 %v516
    %692 = vmatprep.mubr.bf16.mxu0 %v96
    %693 = vmatmul.mubr.bf16.gmra.mxu0 %v95
    %v694 = vpop.f32.mrf.mxu0
    %v695 = vadd.f32 %v655, %v694
    %v696 = vpop.f32.mrf.mxu0
    %v697 = vpop.f32.mrf.mxu0
    %v698 = vpop.f32.mrf.mxu0
    %699 = vdwg.mxu0
    %700 = vmatprep.subr.bf16.mxu0 0
    %701 = vmatpush1.bf16.msra.mxu0 %v531
    %702 = vmatprep.subr.bf16.mxu0 0
    %703 = vmatpush1.bf16.msra.mxu0 %v530
    %704 = vmatprep.subr.bf16.mxu0 0
    %705 = vmatpush1.bf16.msra.mxu0 %v529
    %706 = vmatprep.subr.bf16.mxu0 0
    %707 = vmatpush1.bf16.msra.mxu0 %v528
    %708 = vmatprep.subr.bf16.mxu0 0
    %709 = vmatpush1.bf16.msra.mxu0 %v527
    %710 = vmatprep.subr.bf16.mxu0 0
    %711 = vmatpush1.bf16.msra.mxu0 %v526
    %712 = vmatprep.subr.bf16.mxu0 0
    %713 = vmatpush1.bf16.msra.mxu0 %v525
    %714 = vmatprep.subr.bf16.mxu0 0
    %715 = vmatpush1.bf16.msra.mxu0 %v524
    %716 = vmatprep.subr.bf16.mxu0 0
    %717 = vmatpush2.bf16.msra.mxu0 %v539
    %718 = vmatprep.subr.bf16.mxu0 0
    %719 = vmatpush2.bf16.msra.mxu0 %v538
    %720 = vmatprep.subr.bf16.mxu0 0
    %721 = vmatpush2.bf16.msra.mxu0 %v537
    %722 = vmatprep.subr.bf16.mxu0 0
    %723 = vmatpush2.bf16.msra.mxu0 %v536
    %724 = vmatprep.subr.bf16.mxu0 0
    %725 = vmatpush2.bf16.msra.mxu0 %v535
    %726 = vmatprep.subr.bf16.mxu0 0
    %727 = vmatpush2.bf16.msra.mxu0 %v534
    %728 = vmatprep.subr.bf16.mxu0 0
    %729 = vmatpush2.bf16.msra.mxu0 %v533
    %730 = vmatprep.subr.bf16.mxu0 0
    %731 = vmatpush2.bf16.msra.mxu0 %v532
    %732 = vmatprep.mubr.bf16.mxu0 %v98
    %733 = vmatmul.mubr.bf16.gmra.mxu0 %v97
    %v734 = vpop.f32.mrf.mxu0
    %v735 = vadd.f32 %v695, %v734
    %v736 = vpop.f32.mrf.mxu0
    %v737 = vpop.f32.mrf.mxu0
    %v738 = vpop.f32.mrf.mxu0
    %739 = vdwg.mxu0
    %740 = vmatprep.subr.bf16.mxu0 0
    %741 = vmatpush1.bf16.msra.mxu0 %v547
    %742 = vmatprep.subr.bf16.mxu0 0
    %743 = vmatpush1.bf16.msra.mxu0 %v546
    %744 = vmatprep.subr.bf16.mxu0 0
    %745 = vmatpush1.bf16.msra.mxu0 %v545
    %746 = vmatprep.subr.bf16.mxu0 0
    %747 = vmatpush1.bf16.msra.mxu0 %v544
    %748 = vmatprep.subr.bf16.mxu0 0
    %749 = vmatpush1.bf16.msra.mxu0 %v543
    %750 = vmatprep.subr.bf16.mxu0 0
    %751 = vmatpush1.bf16.msra.mxu0 %v542
    %752 = vmatprep.subr.bf16.mxu0 0
    %753 = vmatpush1.bf16.msra.mxu0 %v541
    %754 = vmatprep.subr.bf16.mxu0 0
    %755 = vmatpush1.bf16.msra.mxu0 %v540
    %756 = vmatprep.subr.bf16.mxu0 0
    %757 = vmatpush2.bf16.msra.mxu0 %v555
    %758 = vmatprep.subr.bf16.mxu0 0
    %759 = vmatpush2.bf16.msra.mxu0 %v554
    %760 = vmatprep.subr.bf16.mxu0 0
    %761 = vmatpush2.bf16.msra.mxu0 %v553
    %762 = vmatprep.subr.bf16.mxu0 0
    %763 = vmatpush2.bf16.msra.mxu0 %v552
    %764 = vmatprep.subr.bf16.mxu0 0
    %765 = vmatpush2.bf16.msra.mxu0 %v551
    %766 = vmatprep.subr.bf16.mxu0 0
    %767 = vmatpush2.bf16.msra.mxu0 %v550
    %768 = vmatprep.subr.bf16.mxu0 0
    %769 = vmatpush2.bf16.msra.mxu0 %v549
    %770 = vmatprep.subr.bf16.mxu0 0
    %771 = vmatpush2.bf16.msra.mxu0 %v548
    %772 = vmatprep.mubr.bf16.mxu0 %v100
    %773 = vmatmul.mubr.bf16.gmra.mxu0 %v99
    %v774 = vpop.f32.mrf.mxu0
    %v775 = vadd.f32 %v735, %v774
    %v776 = vpop.f32.mrf.mxu0
    %v777 = vpop.f32.mrf.mxu0
    %v778 = vpop.f32.mrf.mxu0
    %779 = vdwg.mxu0
    %v780 = vmax.f32 %v775, 0.0
    %v781 = vpack.c.bf16 %v780, %v780
    %v782 = vld [vmem:[%s3] sm:$0xf]
    %v783 = vld [vmem:[%s3 + $0x4] sm:$0xf]
    %v784 = vld [vmem:[%s3 + $0x8] sm:$0xf]
    %v785 = vld [vmem:[%s3 + $0xc] sm:$0xf]
    %v786 = vld [vmem:[%s3 + $0x10] sm:$0xf]
    %v787 = vld [vmem:[%s3 + $0x14] sm:$0xf]
    %v788 = vld [vmem:[%s3 + $0x18] sm:$0xf]
    %v789 = vld [vmem:[%s3 + $0x1c] sm:$0xf]
    %v790 = vld [vmem:[%s3 + $0x20] sm:$0xf]
    %v791 = vld [vmem:[%s3 + $0x24] sm:$0xf]
    %v792 = vld [vmem:[%s3 + $0x28] sm:$0xf]
    %v793 = vld [vmem:[%s3 + $0x2c] sm:$0xf]
    %v794 = vld [vmem:[%s3 + $0x30] sm:$0xf]
    %v795 = vld [vmem:[%s3 + $0x34] sm:$0xf]
    %v796 = vld [vmem:[%s3 + $0x38] sm:$0xf]
    %v797 = vld [vmem:[%s3 + $0x3c] sm:$0xf]
    %v798 = vld [vmem:[%s4] sm:$0x1]
    %v800 = vlaneseq
    %v801 = vshrl.u32 %v800, 7
    %v802 = vsub.s32 0, %v801
    %v803 = vrot.slane %v798, %v802
    %v821 = vunpack.c.l.b16 %v782
    %v822 = vunpack.c.l.b16 %v783
    %v823 = vunpack.c.l.b16 %v784
    %v824 = vunpack.c.l.b16 %v785
    %v825 = vunpack.c.l.b16 %v786
    %v826 = vunpack.c.l.b16 %v787
    %v827 = vunpack.c.l.b16 %v788
    %v828 = vunpack.c.l.b16 %v789
    %v829 = vunpack.c.l.b16 %v790
    %v830 = vunpack.c.l.b16 %v791
    %v831 = vunpack.c.l.b16 %v792
    %v832 = vunpack.c.l.b16 %v793
    %v833 = vunpack.c.l.b16 %v794
    %v834 = vunpack.c.l.b16 %v795
    %v835 = vunpack.c.l.b16 %v796
    %v836 = vunpack.c.l.b16 %v797
    %v837 = vpack.c.b16 %v822, %v821
    %v838 = vpack.c.b16 %v824, %v823
    %v839 = vpack.c.b16 %v826, %v825
    %v840 = vpack.c.b16 %v828, %v827
    %v841 = vpack.c.b16 %v830, %v829
    %v842 = vpack.c.b16 %v832, %v831
    %v843 = vpack.c.b16 %v834, %v833
    %v844 = vpack.c.b16 %v836, %v835
    %853 = vmatprep.subr.bf16.mxu0 0
    %854 = vmatpush1.bf16.msra.mxu0 %v844
    %855 = vmatprep.subr.bf16.mxu0 0
    %856 = vmatpush1.bf16.msra.mxu0 %v843
    %857 = vmatprep.subr.bf16.mxu0 0
    %858 = vmatpush1.bf16.msra.mxu0 %v842
    %859 = vmatprep.subr.bf16.mxu0 0
    %860 = vmatpush1.bf16.msra.mxu0 %v841
    %861 = vmatprep.subr.bf16.mxu0 0
    %862 = vmatpush1.bf16.msra.mxu0 %v840
    %863 = vmatprep.subr.bf16.mxu0 0
    %864 = vmatpush1.bf16.msra.mxu0 %v839
    %865 = vmatprep.subr.bf16.mxu0 0
    %866 = vmatpush1.bf16.msra.mxu0 %v838
    %867 = vmatprep.subr.bf16.mxu0 0
    %868 = vmatpush1.bf16.msra.mxu0 %v837
    %869 = vmatprep.subr.bf16.mxu0 0
    %870 = vmatpush2.bf16.msra.mxu0 0
    %871 = vmatprep.subr.bf16.mxu0 0
    %872 = vmatpush2.bf16.msra.mxu0 0
    %873 = vmatprep.subr.bf16.mxu0 0
    %874 = vmatpush2.bf16.msra.mxu0 0
    %875 = vmatprep.subr.bf16.mxu0 0
    %876 = vmatpush2.bf16.msra.mxu0 0
    %877 = vmatprep.subr.bf16.mxu0 0
    %878 = vmatpush2.bf16.msra.mxu0 0
    %879 = vmatprep.subr.bf16.mxu0 0
    %880 = vmatpush2.bf16.msra.mxu0 0
    %881 = vmatprep.subr.bf16.mxu0 0
    %882 = vmatpush2.bf16.msra.mxu0 0
    %883 = vmatprep.subr.bf16.mxu0 0
    %884 = vmatpush2.bf16.msra.mxu0 0
    %885 = vmatprep.mubr.bf16.mxu0 0
    %886 = vmatmul.mubr.bf16.gmra.mxu0 %v781
    %v887 = vpop.f32.mrf.mxu0
    %v888 = vadd.f32 %v803, %v887
    %v889 = vpop.f32.mrf.mxu0
    %v890 = vpop.f32.mrf.mxu0
    %v891 = vpop.f32.mrf.mxu0
    %892 = vdwg.mxu0
    %v893 = vmax.f32 %v888, 0.0
    %v894 = vpack.c.bf16 %v893, %v893
    %v895 = vld [vmem:[%s5] sm:$0xf]
    %v896 = vld [vmem:[%s5 + $0x4] sm:$0xf]
    %v897 = vld [vmem:[%s5 + $0x8] sm:$0xf]
    %v898 = vld [vmem:[%s5 + $0xc] sm:$0xf]
    %v899 = vld [vmem:[%s5 + $0x10] sm:$0xf]
    %v900 = vld [vmem:[%s5 + $0x14] sm:$0xf]
    %v901 = vld [vmem:[%s5 + $0x18] sm:$0xf]
    %v902 = vld [vmem:[%s5 + $0x1c] sm:$0xf]
    %v903 = vld [vmem:[%s5 + $0x20] sm:$0xf]
    %v904 = vld [vmem:[%s5 + $0x24] sm:$0xf]
    %v905 = vld [vmem:[%s5 + $0x28] sm:$0xf]
    %v906 = vld [vmem:[%s5 + $0x2c] sm:$0xf]
    %v907 = vld [vmem:[%s5 + $0x30] sm:$0xf]
    %v908 = vld [vmem:[%s5 + $0x34] sm:$0xf]
    %v909 = vld [vmem:[%s5 + $0x38] sm:$0xf]
    %v910 = vld [vmem:[%s5 + $0x3c] sm:$0xf]
    %v911 = vld [vmem:[%s6] sm:$0x1]
    %v913 = vlaneseq
    %v914 = vshrl.u32 %v913, 7
    %v915 = vsub.s32 0, %v914
    %v916 = vrot.slane %v911, %v915
    %v934 = vunpack.c.l.b16 %v895
    %v935 = vunpack.c.l.b16 %v896
    %v936 = vunpack.c.l.b16 %v897
    %v937 = vunpack.c.l.b16 %v898
    %v938 = vunpack.c.l.b16 %v899
    %v939 = vunpack.c.l.b16 %v900
    %v940 = vunpack.c.l.b16 %v901
    %v941 = vunpack.c.l.b16 %v902
    %v942 = vunpack.c.l.b16 %v903
    %v943 = vunpack.c.l.b16 %v904
    %v944 = vunpack.c.l.b16 %v905
    %v945 = vunpack.c.l.b16 %v906
    %v946 = vunpack.c.l.b16 %v907
    %v947 = vunpack.c.l.b16 %v908
    %v948 = vunpack.c.l.b16 %v909
    %v949 = vunpack.c.l.b16 %v910
    %v950 = vpack.c.b16 %v935, %v934
    %v951 = vpack.c.b16 %v937, %v936
    %v952 = vpack.c.b16 %v939, %v938
    %v953 = vpack.c.b16 %v941, %v940
    %v954 = vpack.c.b16 %v943, %v942
    %v955 = vpack.c.b16 %v945, %v944
    %v956 = vpack.c.b16 %v947, %v946
    %v957 = vpack.c.b16 %v949, %v948
    %966 = vmatprep.subr.bf16.mxu0 0
    %967 = vmatpush1.bf16.msra.mxu0 %v957
    %968 = vmatprep.subr.bf16.mxu0 0
    %969 = vmatpush1.bf16.msra.mxu0 %v956
    %970 = vmatprep.subr.bf16.mxu0 0
    %971 = vmatpush1.bf16.msra.mxu0 %v955
    %972 = vmatprep.subr.bf16.mxu0 0
    %973 = vmatpush1.bf16.msra.mxu0 %v954
    %974 = vmatprep.subr.bf16.mxu0 0
    %975 = vmatpush1.bf16.msra.mxu0 %v953
    %976 = vmatprep.subr.bf16.mxu0 0
    %977 = vmatpush1.bf16.msra.mxu0 %v952
    %978 = vmatprep.subr.bf16.mxu0 0
    %979 = vmatpush1.bf16.msra.mxu0 %v951
    %980 = vmatprep.subr.bf16.mxu0 0
    %981 = vmatpush1.bf16.msra.mxu0 %v950
    %982 = vmatprep.subr.bf16.mxu0 0
    %983 = vmatpush2.bf16.msra.mxu0 0
    %984 = vmatprep.subr.bf16.mxu0 0
    %985 = vmatpush2.bf16.msra.mxu0 0
    %986 = vmatprep.subr.bf16.mxu0 0
    %987 = vmatpush2.bf16.msra.mxu0 0
    %988 = vmatprep.subr.bf16.mxu0 0
    %989 = vmatpush2.bf16.msra.mxu0 0
    %990 = vmatprep.subr.bf16.mxu0 0
    %991 = vmatpush2.bf16.msra.mxu0 0
    %992 = vmatprep.subr.bf16.mxu0 0
    %993 = vmatpush2.bf16.msra.mxu0 0
    %994 = vmatprep.subr.bf16.mxu0 0
    %995 = vmatpush2.bf16.msra.mxu0 0
    %996 = vmatprep.subr.bf16.mxu0 0
    %997 = vmatpush2.bf16.msra.mxu0 0
    %998 = vmatprep.mubr.bf16.mxu0 0
    %999 = vmatmul.mubr.bf16.gmra.mxu0 %v894
    %v1000 = vpop.f32.mrf.mxu0
    %v1001 = vadd.f32 %v916, %v1000
    %v1002 = vpop.f32.mrf.mxu0
    %v1003 = vpop.f32.mrf.mxu0
    %v1004 = vpop.f32.mrf.mxu0
    %1005 = vdwg.mxu0
    %v1006 = vmax.f32 %v1001, 0.0
    %v1007 = vpack.c.bf16 %v1006, %v1006
    %v1008 = vld [vmem:[%s7] sm:$0xf]
    %v1009 = vld [vmem:[%s7 + $0x4] sm:$0xf]
    %v1010 = vld [vmem:[%s7 + $0x8] sm:$0xf]
    %v1011 = vld [vmem:[%s7 + $0xc] sm:$0xf]
    %v1012 = vld [vmem:[%s7 + $0x10] sm:$0xf]
    %v1013 = vld [vmem:[%s7 + $0x14] sm:$0xf]
    %v1014 = vld [vmem:[%s7 + $0x18] sm:$0xf]
    %v1015 = vld [vmem:[%s7 + $0x1c] sm:$0xf]
    %v1016 = vld [vmem:[%s7 + $0x20] sm:$0xf]
    %v1017 = vld [vmem:[%s7 + $0x24] sm:$0xf]
    %v1018 = vld [vmem:[%s7 + $0x28] sm:$0xf]
    %v1019 = vld [vmem:[%s7 + $0x2c] sm:$0xf]
    %v1020 = vld [vmem:[%s7 + $0x30] sm:$0xf]
    %v1021 = vld [vmem:[%s7 + $0x34] sm:$0xf]
    %v1022 = vld [vmem:[%s7 + $0x38] sm:$0xf]
    %v1023 = vld [vmem:[%s7 + $0x3c] sm:$0xf]
    %v1024 = vld [vmem:[%s8] sm:$0x1]
    %v1026 = vlaneseq
    %v1027 = vshrl.u32 %v1026, 7
    %v1028 = vsub.s32 0, %v1027
    %v1029 = vrot.slane %v1024, %v1028
    %v1047 = vunpack.c.l.b16 %v1008
    %v1048 = vunpack.c.l.b16 %v1009
    %v1049 = vunpack.c.l.b16 %v1010
    %v1050 = vunpack.c.l.b16 %v1011
    %v1051 = vunpack.c.l.b16 %v1012
    %v1052 = vunpack.c.l.b16 %v1013
    %v1053 = vunpack.c.l.b16 %v1014
    %v1054 = vunpack.c.l.b16 %v1015
    %v1055 = vunpack.c.l.b16 %v1016
    %v1056 = vunpack.c.l.b16 %v1017
    %v1057 = vunpack.c.l.b16 %v1018
    %v1058 = vunpack.c.l.b16 %v1019
    %v1059 = vunpack.c.l.b16 %v1020
    %v1060 = vunpack.c.l.b16 %v1021
    %v1061 = vunpack.c.l.b16 %v1022
    %v1062 = vunpack.c.l.b16 %v1023
    %v1063 = vpack.c.b16 %v1048, %v1047
    %v1064 = vpack.c.b16 %v1050, %v1049
    %v1065 = vpack.c.b16 %v1052, %v1051
    %v1066 = vpack.c.b16 %v1054, %v1053
    %v1067 = vpack.c.b16 %v1056, %v1055
    %v1068 = vpack.c.b16 %v1058, %v1057
    %v1069 = vpack.c.b16 %v1060, %v1059
    %v1070 = vpack.c.b16 %v1062, %v1061
    %1079 = vmatprep.subr.bf16.mxu0 0
    %1080 = vmatpush1.bf16.msra.mxu0 %v1070
    %1081 = vmatprep.subr.bf16.mxu0 0
    %1082 = vmatpush1.bf16.msra.mxu0 %v1069
    %1083 = vmatprep.subr.bf16.mxu0 0
    %1084 = vmatpush1.bf16.msra.mxu0 %v1068
    %1085 = vmatprep.subr.bf16.mxu0 0
    %1086 = vmatpush1.bf16.msra.mxu0 %v1067
    %1087 = vmatprep.subr.bf16.mxu0 0
    %1088 = vmatpush1.bf16.msra.mxu0 %v1066
    %1089 = vmatprep.subr.bf16.mxu0 0
    %1090 = vmatpush1.bf16.msra.mxu0 %v1065
    %1091 = vmatprep.subr.bf16.mxu0 0
    %1092 = vmatpush1.bf16.msra.mxu0 %v1064
    %1093 = vmatprep.subr.bf16.mxu0 0
    %1094 = vmatpush1.bf16.msra.mxu0 %v1063
    %1095 = vmatprep.subr.bf16.mxu0 0
    %1096 = vmatpush2.bf16.msra.mxu0 0
    %1097 = vmatprep.subr.bf16.mxu0 0
    %1098 = vmatpush2.bf16.msra.mxu0 0
    %1099 = vmatprep.subr.bf16.mxu0 0
    %1100 = vmatpush2.bf16.msra.mxu0 0
    %1101 = vmatprep.subr.bf16.mxu0 0
    %1102 = vmatpush2.bf16.msra.mxu0 0
    %1103 = vmatprep.subr.bf16.mxu0 0
    %1104 = vmatpush2.bf16.msra.mxu0 0
    %1105 = vmatprep.subr.bf16.mxu0 0
    %1106 = vmatpush2.bf16.msra.mxu0 0
    %1107 = vmatprep.subr.bf16.mxu0 0
    %1108 = vmatpush2.bf16.msra.mxu0 0
    %1109 = vmatprep.subr.bf16.mxu0 0
    %1110 = vmatpush2.bf16.msra.mxu0 0
    %1111 = vmatprep.mubr.bf16.mxu0 0
    %1112 = vmatmul.mubr.bf16.gmra.mxu0 %v1007
    %v1113 = vpop.f32.mrf.mxu0
    %v1114 = vadd.f32 %v1029, %v1113
    %v1115 = vpop.f32.mrf.mxu0
    %v1116 = vpop.f32.mrf.mxu0
    %v1117 = vpop.f32.mrf.mxu0
    %1118 = vdwg.mxu0
    %vm1119 = vcmask 58368
    %1120 = vst.msk [vmem:[%s9] sm:$0x3] %vm1119, %v1114
    // Predicated region
    $region42: #{multi_ion_readout_forward.1} parent=1 // pred_check
      _
    $region43: #{multi_ion_readout_forward.1} parent=1 // pred_check_branch
      %1122 = sbr.rel (0) target = $region45
    $region44: #{multi_ion_readout_forward.1} parent=1 // pred_region
      _
    $region45: #{multi_ion_readout_forward.1} parent=1 // pred_fallthru
      _
    // Predicated region
    $region46: #{multi_ion_readout_forward.1} parent=1 // pred_check
      _
    $region47: #{multi_ion_readout_forward.1} parent=1 // pred_check_branch
      %1124 = sbr.rel (0) target = $region49
    $region48: #{multi_ion_readout_forward.1} parent=1 // pred_region
      _
    $region49: #{multi_ion_readout_forward.1} parent=1 // pred_fallthru
      _
    %1125 = vsyncpa [#allocation3], 1

</llo_original>
